<compile_context>
chip_gen: v6e
topology: v6e:2x2x1
jax: 0.10.0
libtpu: 0.0.40
codegen_flags: <defaults>
</compile_context>

<pallas_src>
import functools

import jax
import jax.numpy as jnp
import numpy as np
from jax import lax
from jax.experimental import pallas as pl
from jax.experimental.pallas import tpu as pltpu


def _round_up(x, m):
    return (x + m - 1) // m * m


# ---------------------------------------------------------------------------
# Pallas kernel: one image per grid step.
# ---------------------------------------------------------------------------
def sepconv2d_kernel(x_ref, dww_ref, dwb_ref, pww_ref, pwb_ref, o_ref,
                     *, K, dilation, Wp, L):
    """Refs (per grid step):
      x_ref  : (1, Cin_p, Lin)   zero-padded image, row-major flat with row
                                 stride Wp (flat index = h*Wp + w)
      dww_ref: (Cin_p, K*K)      depthwise weights, one column per tap
      dwb_ref: (Cin_p, 1)        depthwise bias
      pww_ref: (Cout_p, Cin_p)   pointwise 1x1 weights
      pwb_ref: (Cout_p, 1)       pointwise bias
      o_ref  : (1, Cout_p, L)    output columns j = h*Wp + w (w < W_out valid)
    """
    dww = dww_ref[...]

    # ---- depthwise KxK conv: sum of K*K shifted taps (VPU) -------------------
    acc = None
    for ky in range(K):
        for kx in range(K):
            tap = ky * K + kx
            off = ky * dilation * Wp + kx * dilation          # static offset
            sl = x_ref[0, :, pl.ds(off, L)]                   # (Cin_p, L)
            contrib = sl * dww[:, tap:tap + 1]                # per-channel scale
            acc = contrib if acc is None else acc + contrib
    acc = acc + dwb_ref[...]                                  # (Cin_p, 1) bcast

    # ---- pointwise 1x1 conv: single MXU matmul over channels -----------------
    out = jnp.dot(pww_ref[...], acc,
                  preferred_element_type=jnp.float32) + pwb_ref[...]
    o_ref[0] = out


# ---------------------------------------------------------------------------
# Wrapper: layout/padding plumbing + pallas_call.
# ---------------------------------------------------------------------------
def sep_conv2d_forward(x, dw_w, dw_b, pw_w, pw_b, *,
                       stride=1, padding=0, dilation=1):
    # TODO(synk): stride > 1 would require strided tap slices; stride=1 only.
    assert stride == 1, "Pallas SepConv2d kernel implements stride=1 only"

    N, Cin, H, W = x.shape
    Cout = pw_w.shape[0]
    K = dw_w.shape[-1]

    Hp, Wp = H + 2 * padding, W + 2 * padding
    H_out = Hp - dilation * (K - 1)
    W_out = Wp - dilation * (K - 1)

    # Sublane (channel) padding to multiples of 8.
    Cin_p = _round_up(Cin, 8)
    Cout_p = _round_up(Cout, 8)

    # Lane extents: compute over L = H_out*Wp columns rounded up to 128 so the
    # output stores are lane-dense; pad the flat input so the largest tap
    # slice (offset (K-1)*d*(Wp+1)) stays in bounds.
    Lout = _round_up(H_out * Wp, 128)
    Lin = _round_up((K - 1) * dilation * (Wp + 1) + Lout, 128)

    # ---- input/weight prep (pure layout plumbing) ----------------------------
    xp = jnp.pad(x.astype(jnp.float32),
                 ((0, 0), (0, Cin_p - Cin),
                  (padding, padding), (padding, padding)))
    x_flat = xp.reshape(N, Cin_p, Hp * Wp)
    x_flat = jnp.pad(x_flat, ((0, 0), (0, 0), (0, Lin - Hp * Wp)))

    dww = jnp.pad(dw_w.reshape(Cin, K * K).astype(jnp.float32),
                  ((0, Cin_p - Cin), (0, 0)))
    dwb = jnp.pad(dw_b.reshape(Cin, 1).astype(jnp.float32),
                  ((0, Cin_p - Cin), (0, 0)))
    pww = jnp.pad(pw_w.reshape(Cout, Cin).astype(jnp.float32),
                  ((0, Cout_p - Cout), (0, Cin_p - Cin)))
    pwb = jnp.pad(pw_b.reshape(Cout, 1).astype(jnp.float32),
                  ((0, Cout_p - Cout), (0, 0)))

    kernel = functools.partial(sepconv2d_kernel,
                               K=K, dilation=dilation, Wp=Wp, L=Lout)

    # VMEM budget: double-buffered input/output blocks + resident weights +
    # live accumulator, with generous headroom (still tiny vs 64 MiB on v7x).
    blk_bytes = 4 * (Cin_p * Lin + Cout_p * Lout + Cin_p * Lout
                     + Cin_p * (K * K + 1) + Cout_p * (Cin_p + 1))
    vmem_limit = int(min(max(4 * blk_bytes, 4 << 20), 100 << 20))

    flops = 2 * N * H_out * W_out * (Cin * K * K + Cin * Cout)
    bytes_accessed = 4 * (N * Cin_p * Lin + N * Cout_p * Lout
                          + Cin_p * (K * K + 1) + Cout_p * (Cin_p + 1))

    out_flat = pl.pallas_call(
        kernel,
        out_shape=jax.ShapeDtypeStruct((N, Cout_p, Lout), jnp.float32),
        grid=(N,),
        in_specs=[
            pl.BlockSpec((1, Cin_p, Lin), lambda n: (n, 0, 0)),
            pl.BlockSpec((Cin_p, K * K), lambda n: (0, 0)),
            pl.BlockSpec((Cin_p, 1), lambda n: (0, 0)),
            pl.BlockSpec((Cout_p, Cin_p), lambda n: (0, 0)),
            pl.BlockSpec((Cout_p, 1), lambda n: (0, 0)),
        ],
        out_specs=pl.BlockSpec((1, Cout_p, Lout), lambda n: (n, 0, 0)),
        compiler_params=pltpu.CompilerParams(
            dimension_semantics=("parallel",),
            vmem_limit_bytes=vmem_limit),
        cost_estimate=pl.CostEstimate(flops=flops, transcendentals=0,
                                      bytes_accessed=bytes_accessed),
    )(x_flat, dww, dwb, pww, pwb)

    # Drop channel padding and the invalid/padded lane columns.
    out = out_flat[:, :Cout, :H_out * Wp]
    out = out.reshape(N, Cout, H_out, Wp)[:, :, :, :W_out]
    return out


# ---------------------------------------------------------------------------
# Pure-JAX reference (lax convs) for a correctness check.
# ---------------------------------------------------------------------------
def sep_conv2d_reference(x, dw_w, dw_b, pw_w, pw_b, *,
                         stride=1, padding=0, dilation=1):
    dn = ('NCHW', 'OIHW', 'NCHW')
    y = lax.conv_general_dilated(
        x, dw_w, (stride, stride),
        [(padding, padding), (padding, padding)],
        rhs_dilation=(dilation, dilation),
        dimension_numbers=dn,
        feature_group_count=x.shape[1])
    y = y + dw_b.reshape(1, -1, 1, 1)
    z = lax.conv_general_dilated(y, pw_w, (1, 1), 'VALID',
                                 dimension_numbers=dn)
    return z + pw_b.reshape(1, -1, 1, 1)


# ---------------------------------------------------------------------------
if __name__ == "__main__":
    N, Cin, Cout, H, W = 2, 4, 8, 16, 16
    key = jax.random.PRNGKey(0)
    ks = jax.random.split(key, 5)
    x = jax.random.normal(ks[0], (N, Cin, H, W), jnp.float32)

    configs = [
        dict(kernel_size=3, stride=1, padding=1, dilation=1),  # typical usage
        dict(kernel_size=1, stride=1, padding=0, dilation=1),  # module defaults
    ]
    for ci, cfg in enumerate(configs):
        K = cfg['kernel_size']
        dw_w = 0.2 * jax.random.normal(jax.random.fold_in(ks[1], ci),
                                       (Cin, 1, K, K), jnp.float32)
        dw_b = 0.1 * jax.random.normal(jax.random.fold_in(ks[2], ci),
                                       (Cin,), jnp.float32)
        pw_w = 0.2 * jax.random.normal(jax.random.fold_in(ks[3], ci),
                                       (Cout, Cin, 1, 1), jnp.float32)
        pw_b = 0.1 * jax.random.normal(jax.random.fold_in(ks[4], ci),
                                       (Cout,), jnp.float32)

        out = sep_conv2d_forward(
            x, dw_w, dw_b, pw_w, pw_b,
            stride=cfg['stride'], padding=cfg['padding'],
            dilation=cfg['dilation'])
        out = jax.block_until_ready(out)

        ref = jax.block_until_ready(
            sep_conv2d_reference(
                x, dw_w, dw_b, pw_w, pw_b,
                stride=cfg['stride'], padding=cfg['padding'],
                dilation=cfg['dilation']))

        np.testing.assert_allclose(np.asarray(out), np.asarray(ref),
                                   rtol=2e-3, atol=2e-3)

    print("KERNEL_OK")
</pallas_src>

<mosaic_0001>
module attributes {stable_mosaic.version = 11 : i64} {
  func.func @sepconv2d_kernel(%arg0: i32, %arg1: memref<1x8x512xf32, #tpu.memory_space<vmem>>, %arg2: memref<8x9xf32, #tpu.memory_space<vmem>>, %arg3: memref<8x1xf32, #tpu.memory_space<vmem>>, %arg4: memref<8x8xf32, #tpu.memory_space<vmem>>, %arg5: memref<8x1xf32, #tpu.memory_space<vmem>>, %arg6: memref<1x8x384xf32, #tpu.memory_space<vmem>>) attributes {dimension_semantics = [#tpu.dimension_semantics<parallel>], iteration_bounds = array<i64: 2>, scalar_prefetch = 0 : i64, scratch_operands = 0 : i64, tpu.core_type = #tpu.core_type<tc>, window_params = [{transform_indices = @transform_0, window_bounds = array<i64: 1, 8, 512>}, {pipeline_mode = #tpu.pipeline_mode<synchronous>, transform_indices = @transform_1, window_bounds = array<i64: 8, 9>}, {pipeline_mode = #tpu.pipeline_mode<synchronous>, transform_indices = @transform_2, window_bounds = array<i64: 8, 1>}, {pipeline_mode = #tpu.pipeline_mode<synchronous>, transform_indices = @transform_3, window_bounds = array<i64: 8, 8>}, {pipeline_mode = #tpu.pipeline_mode<synchronous>, transform_indices = @transform_4, window_bounds = array<i64: 8, 1>}, {transform_indices = @transform_5, window_bounds = array<i64: 1, 8, 384>}]} {
    %c0 = arith.constant 0 : index
    %c0_0 = arith.constant 0 : index
    %0 = vector.load %arg2[%c0, %c0_0] : memref<8x9xf32, #tpu.memory_space<vmem>>, vector<8x9xf32>
    %c0_1 = arith.constant 0 : index
    %c0_2 = arith.constant 0 : index
    %c0_3 = arith.constant 0 : index
    %1 = vector.load %arg1[%c0_1, %c0_2, %c0_3] : memref<1x8x512xf32, #tpu.memory_space<vmem>>, vector<1x8x384xf32>
    %2 = vector.shape_cast %1 : vector<1x8x384xf32> to vector<8x384xf32>
    %3 = vector.extract_strided_slice %0 {offsets = [0, 0], sizes = [8, 1], strides = [1, 1]} : vector<8x9xf32> to vector<8x1xf32>
    %4 = vector.broadcast %3 : vector<8x1xf32> to vector<8x384xf32>
    %5 = arith.mulf %2, %4 : vector<8x384xf32>
    %c0_4 = arith.constant 0 : index
    %c0_5 = arith.constant 0 : index
    %c1 = arith.constant 1 : index
    %6 = vector.load %arg1[%c0_4, %c0_5, %c1] : memref<1x8x512xf32, #tpu.memory_space<vmem>>, vector<1x8x384xf32>
    %7 = vector.shape_cast %6 : vector<1x8x384xf32> to vector<8x384xf32>
    %8 = vector.extract_strided_slice %0 {offsets = [0, 1], sizes = [8, 1], strides = [1, 1]} : vector<8x9xf32> to vector<8x1xf32>
    %9 = vector.broadcast %8 : vector<8x1xf32> to vector<8x384xf32>
    %10 = arith.mulf %7, %9 : vector<8x384xf32>
    %11 = arith.addf %5, %10 : vector<8x384xf32>
    %c0_6 = arith.constant 0 : index
    %c0_7 = arith.constant 0 : index
    %c2 = arith.constant 2 : index
    %12 = vector.load %arg1[%c0_6, %c0_7, %c2] : memref<1x8x512xf32, #tpu.memory_space<vmem>>, vector<1x8x384xf32>
    %13 = vector.shape_cast %12 : vector<1x8x384xf32> to vector<8x384xf32>
    %14 = vector.extract_strided_slice %0 {offsets = [0, 2], sizes = [8, 1], strides = [1, 1]} : vector<8x9xf32> to vector<8x1xf32>
    %15 = vector.broadcast %14 : vector<8x1xf32> to vector<8x384xf32>
    %16 = arith.mulf %13, %15 : vector<8x384xf32>
    %17 = arith.addf %11, %16 : vector<8x384xf32>
    %c0_8 = arith.constant 0 : index
    %c0_9 = arith.constant 0 : index
    %c18 = arith.constant 18 : index
    %18 = vector.load %arg1[%c0_8, %c0_9, %c18] : memref<1x8x512xf32, #tpu.memory_space<vmem>>, vector<1x8x384xf32>
    %19 = vector.shape_cast %18 : vector<1x8x384xf32> to vector<8x384xf32>
    %20 = vector.extract_strided_slice %0 {offsets = [0, 3], sizes = [8, 1], strides = [1, 1]} : vector<8x9xf32> to vector<8x1xf32>
    %21 = vector.broadcast %20 : vector<8x1xf32> to vector<8x384xf32>
    %22 = arith.mulf %19, %21 : vector<8x384xf32>
    %23 = arith.addf %17, %22 : vector<8x384xf32>
    %c0_10 = arith.constant 0 : index
    %c0_11 = arith.constant 0 : index
    %c19 = arith.constant 19 : index
    %24 = vector.load %arg1[%c0_10, %c0_11, %c19] : memref<1x8x512xf32, #tpu.memory_space<vmem>>, vector<1x8x384xf32>
    %25 = vector.shape_cast %24 : vector<1x8x384xf32> to vector<8x384xf32>
    %26 = vector.extract_strided_slice %0 {offsets = [0, 4], sizes = [8, 1], strides = [1, 1]} : vector<8x9xf32> to vector<8x1xf32>
    %27 = vector.broadcast %26 : vector<8x1xf32> to vector<8x384xf32>
    %28 = arith.mulf %25, %27 : vector<8x384xf32>
    %29 = arith.addf %23, %28 : vector<8x384xf32>
    %c0_12 = arith.constant 0 : index
    %c0_13 = arith.constant 0 : index
    %c20 = arith.constant 20 : index
    %30 = vector.load %arg1[%c0_12, %c0_13, %c20] : memref<1x8x512xf32, #tpu.memory_space<vmem>>, vector<1x8x384xf32>
    %31 = vector.shape_cast %30 : vector<1x8x384xf32> to vector<8x384xf32>
    %32 = vector.extract_strided_slice %0 {offsets = [0, 5], sizes = [8, 1], strides = [1, 1]} : vector<8x9xf32> to vector<8x1xf32>
    %33 = vector.broadcast %32 : vector<8x1xf32> to vector<8x384xf32>
    %34 = arith.mulf %31, %33 : vector<8x384xf32>
    %35 = arith.addf %29, %34 : vector<8x384xf32>
    %c0_14 = arith.constant 0 : index
    %c0_15 = arith.constant 0 : index
    %c36 = arith.constant 36 : index
    %36 = vector.load %arg1[%c0_14, %c0_15, %c36] : memref<1x8x512xf32, #tpu.memory_space<vmem>>, vector<1x8x384xf32>
    %37 = vector.shape_cast %36 : vector<1x8x384xf32> to vector<8x384xf32>
    %38 = vector.extract_strided_slice %0 {offsets = [0, 6], sizes = [8, 1], strides = [1, 1]} : vector<8x9xf32> to vector<8x1xf32>
    %39 = vector.broadcast %38 : vector<8x1xf32> to vector<8x384xf32>
    %40 = arith.mulf %37, %39 : vector<8x384xf32>
    %41 = arith.addf %35, %40 : vector<8x384xf32>
    %c0_16 = arith.constant 0 : index
    %c0_17 = arith.constant 0 : index
    %c37 = arith.constant 37 : index
    %42 = vector.load %arg1[%c0_16, %c0_17, %c37] : memref<1x8x512xf32, #tpu.memory_space<vmem>>, vector<1x8x384xf32>
    %43 = vector.shape_cast %42 : vector<1x8x384xf32> to vector<8x384xf32>
    %44 = vector.extract_strided_slice %0 {offsets = [0, 7], sizes = [8, 1], strides = [1, 1]} : vector<8x9xf32> to vector<8x1xf32>
    %45 = vector.broadcast %44 : vector<8x1xf32> to vector<8x384xf32>
    %46 = arith.mulf %43, %45 : vector<8x384xf32>
    %47 = arith.addf %41, %46 : vector<8x384xf32>
    %c0_18 = arith.constant 0 : index
    %c0_19 = arith.constant 0 : index
    %c38 = arith.constant 38 : index
    %48 = vector.load %arg1[%c0_18, %c0_19, %c38] : memref<1x8x512xf32, #tpu.memory_space<vmem>>, vector<1x8x384xf32>
    %49 = vector.shape_cast %48 : vector<1x8x384xf32> to vector<8x384xf32>
    %50 = vector.extract_strided_slice %0 {offsets = [0, 8], sizes = [8, 1], strides = [1, 1]} : vector<8x9xf32> to vector<8x1xf32>
    %51 = vector.broadcast %50 : vector<8x1xf32> to vector<8x384xf32>
    %52 = arith.mulf %49, %51 : vector<8x384xf32>
    %53 = arith.addf %47, %52 : vector<8x384xf32>
    %c0_20 = arith.constant 0 : index
    %c0_21 = arith.constant 0 : index
    %54 = vector.load %arg3[%c0_20, %c0_21] : memref<8x1xf32, #tpu.memory_space<vmem>>, vector<8x1xf32>
    %55 = vector.broadcast %54 : vector<8x1xf32> to vector<8x384xf32>
    %56 = arith.addf %53, %55 : vector<8x384xf32>
    %c0_22 = arith.constant 0 : index
    %c0_23 = arith.constant 0 : index
    %57 = vector.load %arg4[%c0_22, %c0_23] : memref<8x8xf32, #tpu.memory_space<vmem>>, vector<8x8xf32>
    %cst = arith.constant dense<0.000000e+00> : vector<8x384xf32>
    %58 = tpu.matmul %57, %56, %cst {dimension_numbers = #tpu.dot_dimension_numbers<[1], [0], [0], [1], [0, 0, 1, 1], [], []>} : vector<8x8xf32>, vector<8x384xf32>, vector<8x384xf32> -> vector<8x384xf32>
    %c0_24 = arith.constant 0 : index
    %c0_25 = arith.constant 0 : index
    %59 = vector.load %arg5[%c0_24, %c0_25] : memref<8x1xf32, #tpu.memory_space<vmem>>, vector<8x1xf32>
    %60 = vector.broadcast %59 : vector<8x1xf32> to vector<8x384xf32>
    %61 = arith.addf %58, %60 : vector<8x384xf32>
    %c0_26 = arith.constant 0 : index
    %c0_27 = arith.constant 0 : index
    %c0_28 = arith.constant 0 : index
    %62 = vector.load %arg6[%c0_26, %c0_27, %c0_28] : memref<1x8x384xf32, #tpu.memory_space<vmem>>, vector<1x8x384xf32>
    %63 = vector.shape_cast %62 : vector<1x8x384xf32> to vector<8x384xf32>
    %64 = vector.shape_cast %61 : vector<8x384xf32> to vector<1x8x384xf32>
    tpu.vector_store %arg6[%c0_26, %c0_27, %c0_28], %64 {strides = array<i32>} : memref<1x8x384xf32, #tpu.memory_space<vmem>>, vector<1x8x384xf32>,
    return
  }
  func.func @transform_0(%arg0: i32) -> (i32, i32, i32) {
    %c0_i32 = arith.constant 0 : i32
    %c0_i32_0 = arith.constant 0 : i32
    %c0_i32_1 = arith.constant 0 : i32
    return %arg0, %c0_i32, %c0_i32_0 : i32, i32, i32
  }
  func.func @transform_1(%arg0: i32) -> (i32, i32) {
    %c0_i32 = arith.constant 0 : i32
    %c0_i32_0 = arith.constant 0 : i32
    %c0_i32_1 = arith.constant 0 : i32
    return %c0_i32, %c0_i32_0 : i32, i32
  }
  func.func @transform_2(%arg0: i32) -> (i32, i32) {
    %c0_i32 = arith.constant 0 : i32
    %c0_i32_0 = arith.constant 0 : i32
    %c0_i32_1 = arith.constant 0 : i32
    return %c0_i32, %c0_i32_0 : i32, i32
  }
  func.func @transform_3(%arg0: i32) -> (i32, i32) {
    %c0_i32 = arith.constant 0 : i32
    %c0_i32_0 = arith.constant 0 : i32
    %c0_i32_1 = arith.constant 0 : i32
    return %c0_i32, %c0_i32_0 : i32, i32
  }
  func.func @transform_4(%arg0: i32) -> (i32, i32) {
    %c0_i32 = arith.constant 0 : i32
    %c0_i32_0 = arith.constant 0 : i32
    %c0_i32_1 = arith.constant 0 : i32
    return %c0_i32, %c0_i32_0 : i32, i32
  }
  func.func @transform_5(%arg0: i32) -> (i32, i32, i32) {
    %c0_i32 = arith.constant 0 : i32
    %c0_i32_0 = arith.constant 0 : i32
    %c0_i32_1 = arith.constant 0 : i32
    return %arg0, %c0_i32, %c0_i32_0 : i32, i32, i32
  }
}

</mosaic_0001>

<llo_original>
// kernel: tpu_custom_call.1
$region0: #{tpu_custom_call.1}
  #allocation0 [shape = 'u32[]', space=smem, size = 0x4, offset = 0x4, fixed_abs, tag = 'smem constant byte address 0x4 - core index']
  #allocation1 [shape = 'u32[144,128]{1,0:T(1,128)}', space=vmem, size = 0x12000, scoped, tag = 'internal scratch']
  %s0 = inlined_call_operand.hbm [shape: f32[2,8,512], index: 0, kind: input, shape index: {}]
  %s1 = inlined_call_operand.vmem [shape: f32[8,9], index: 1, kind: input, shape index: {}]
  %s2 = inlined_call_operand.vmem [shape: f32[8,1], index: 2, kind: input, shape index: {}]
  %s3 = inlined_call_operand.vmem [shape: f32[8,8], index: 3, kind: input, shape index: {}]
  %s4 = inlined_call_operand.vmem [shape: f32[8,1], index: 4, kind: input, shape index: {}]
  %s5 = inlined_call_operand.hbm [shape: f32[2,8,384], index: 5, kind: output, shape index: {}]
  %s6 = sld [smem:[#allocation0]]
  $region57: #{tpu_custom_call.1} parent=0
    _
  %s8 = ssub.s32 1, %s6
  %s9 = scalar_select 0, %s8, %s6
  $region1: #{tpu_custom_call.1} parent=0
    #allocation2 [shape = 'u8[32768]{0}', space=vmem, size = 0x8000, scoped, tag = 'input window, operand 0']
    #allocation3 [shape = 's32[2]{0}', space=sflag, size = 0x8, scoped, tag = 'scoped memory for tpu_custom_call.1']
    #allocation4 [shape = 's32[2]{0}', space=sflag, size = 0x8, scoped, tag = 'scoped memory for tpu_custom_call.1']
    #allocation5 [shape = 'u8[24576]{0}', space=vmem, size = 0x6000, scoped, tag = 'output window, operand 0']
    %10 = vsyncpa [#allocation3], 0
    %s11 = scalar_lea.sflag [#allocation3], 1
    %12 = vsyncpa %s11, 0
    %13 = vsyncpa [#allocation4], 0
    %s14 = scalar_lea.sflag [#allocation4], 1
    %15 = vsyncpa %s14, 0
    loop: start=0, step=1, limit=4
    $region2: #{tpu_custom_call.1} parent=1 // loop_pre_header
      _
    $region3: #{tpu_custom_call.1} parent=1 // loop_header
      %s17 = sphi 0, %s21
      %p18 = scmp.ge.s32.totalorder %s17, 4
      %s27 = sphi 0, %s29
      %s30 = sphi 0, %s27
      %s31 = sphi 0, %s30
      %s47 = sphi 0, %s31
      %s51 = sphi 0, %s51
      %s53 = sphi 0, %s51
      %s54 = sphi 0, %s53
      %s68 = sphi 0, %s54
      %s72 = sphi 0, %s72
      %s74 = sphi 0, %s72
      %s75 = sphi 0, %s74
      %s89 = sphi 0, %s75
      %s93 = sphi 0, %s93
      %s95 = sphi 0, %s93
      %s96 = sphi 0, %s95
      %s110 = sphi 0, %s96
      %s114 = sphi 0, %s114
      %s116 = sphi 0, %s114
      %s117 = sphi 0, %s116
      %s131 = sphi 0, %s117
      %s137 = sphi 0, %s139
      %s140 = sphi 0, %s137
      %s141 = sphi 0, %s140
      %s157 = sphi 0, %s141
    $region4: #{tpu_custom_call.1} parent=1 // loop_header_branch
      %20 = sbr.rel (%p18) target = $region8
    $region5: #{tpu_custom_call.1} parent=1 // loop_body
      %s22 = ssub.s32 %s17, 1
      %s23 = ssub.s32 %s17, 2
      %s24 = sadd.s32 %s17, 1
      %s25 = ssub.s32 %s17, %s24
      %p26 = scmp.eq.s32.totalorder %s25, 0
      %s28 = sadd.s32 %s27, 1
      %s29 = scalar_select %p26, %s27, %s28
      %p32 = pneg %p26
      %p33 = scmp.eq.s32.totalorder %s17, 1
      %p34 = por %p32, %p33
      %p35 = scmp.ne.s32.totalorder %s27, %s30
      %p36 = scmp.eq.s32.totalorder %s17, 0
      %p37 = por %p35, %p36
      %p38 = scmp.ne.s32.totalorder %s27, %s30
      %p39 = scmp.eq.s32.totalorder %s22, 1
      %p40 = por %p38, %p39
      %p41 = scmp.ne.s32.totalorder %s30, %s31
      %p42 = scmp.eq.s32.totalorder %s22, 0
      %p43 = por %p41, %p42
      %p44 = scmp.ne.s32.totalorder %s30, %s31
      %p45 = scmp.eq.s32.totalorder %s23, 1
      %p46 = por %p44, %p45
      %p48 = scmp.ne.s32.totalorder %s31, %s47
      %p49 = scmp.eq.s32.totalorder %s23, 0
      %p50 = por %p48, %p49
      %s52 = sadd.s32 %s51, 1
      %p55 = scmp.eq.s32.totalorder %s17, 1
      %p56 = scmp.ne.s32.totalorder %s51, %s53
      %p57 = scmp.eq.s32.totalorder %s17, 0
      %p58 = por %p56, %p57
      %p59 = scmp.ne.s32.totalorder %s51, %s53
      %p60 = scmp.eq.s32.totalorder %s22, 1
      %p61 = por %p59, %p60
      %p62 = scmp.ne.s32.totalorder %s53, %s54
      %p63 = scmp.eq.s32.totalorder %s22, 0
      %p64 = por %p62, %p63
      %p65 = scmp.ne.s32.totalorder %s53, %s54
      %p66 = scmp.eq.s32.totalorder %s23, 1
      %p67 = por %p65, %p66
      %p69 = scmp.ne.s32.totalorder %s54, %s68
      %p70 = scmp.eq.s32.totalorder %s23, 0
      %p71 = por %p69, %p70
      %s73 = sadd.s32 %s72, 1
      %p76 = scmp.eq.s32.totalorder %s17, 1
      %p77 = scmp.ne.s32.totalorder %s72, %s74
      %p78 = scmp.eq.s32.totalorder %s17, 0
      %p79 = por %p77, %p78
      %p80 = scmp.ne.s32.totalorder %s72, %s74
      %p81 = scmp.eq.s32.totalorder %s22, 1
      %p82 = por %p80, %p81
      %p83 = scmp.ne.s32.totalorder %s74, %s75
      %p84 = scmp.eq.s32.totalorder %s22, 0
      %p85 = por %p83, %p84
      %p86 = scmp.ne.s32.totalorder %s74, %s75
      %p87 = scmp.eq.s32.totalorder %s23, 1
      %p88 = por %p86, %p87
      %p90 = scmp.ne.s32.totalorder %s75, %s89
      %p91 = scmp.eq.s32.totalorder %s23, 0
      %p92 = por %p90, %p91
      %s94 = sadd.s32 %s93, 1
      %p97 = scmp.eq.s32.totalorder %s17, 1
      %p98 = scmp.ne.s32.totalorder %s93, %s95
      %p99 = scmp.eq.s32.totalorder %s17, 0
      %p100 = por %p98, %p99
      %p101 = scmp.ne.s32.totalorder %s93, %s95
      %p102 = scmp.eq.s32.totalorder %s22, 1
      %p103 = por %p101, %p102
      %p104 = scmp.ne.s32.totalorder %s95, %s96
      %p105 = scmp.eq.s32.totalorder %s22, 0
      %p106 = por %p104, %p105
      %p107 = scmp.ne.s32.totalorder %s95, %s96
      %p108 = scmp.eq.s32.totalorder %s23, 1
      %p109 = por %p107, %p108
      %p111 = scmp.ne.s32.totalorder %s96, %s110
      %p112 = scmp.eq.s32.totalorder %s23, 0
      %p113 = por %p111, %p112
      %s115 = sadd.s32 %s114, 1
      %p118 = scmp.eq.s32.totalorder %s17, 1
      %p119 = scmp.ne.s32.totalorder %s114, %s116
      %p120 = scmp.eq.s32.totalorder %s17, 0
      %p121 = por %p119, %p120
      %p122 = scmp.ne.s32.totalorder %s114, %s116
      %p123 = scmp.eq.s32.totalorder %s22, 1
      %p124 = por %p122, %p123
      %p125 = scmp.ne.s32.totalorder %s116, %s117
      %p126 = scmp.eq.s32.totalorder %s22, 0
      %p127 = por %p125, %p126
      %p128 = scmp.ne.s32.totalorder %s116, %s117
      %p129 = scmp.eq.s32.totalorder %s23, 1
      %p130 = por %p128, %p129
      %p132 = scmp.ne.s32.totalorder %s117, %s131
      %p133 = scmp.eq.s32.totalorder %s23, 0
      %p134 = por %p132, %p133
      %s135 = ssub.s32 %s17, %s24
      %p136 = scmp.eq.s32.totalorder %s135, 0
      %s138 = sadd.s32 %s137, 1
      %s139 = scalar_select %p136, %s137, %s138
      %p142 = pneg %p136
      %p143 = scmp.eq.s32.totalorder %s17, 1
      %p144 = por %p142, %p143
      %p145 = scmp.ne.s32.totalorder %s137, %s140
      %p146 = scmp.eq.s32.totalorder %s17, 0
      %p147 = por %p145, %p146
      %p148 = scmp.ne.s32.totalorder %s137, %s140
      %p149 = scmp.eq.s32.totalorder %s22, 1
      %p150 = por %p148, %p149
      %p151 = scmp.ne.s32.totalorder %s140, %s141
      %p152 = scmp.eq.s32.totalorder %s22, 0
      %p153 = por %p151, %p152
      %p154 = scmp.ne.s32.totalorder %s140, %s141
      %p155 = scmp.eq.s32.totalorder %s23, 1
      %p156 = por %p154, %p155
      %p158 = scmp.ne.s32.totalorder %s141, %s157
      %p159 = scmp.eq.s32.totalorder %s23, 0
      %p160 = por %p158, %p159
      %p161 = scmp.le.s32.totalorder 1, %s17
      %p162 = scmp.lt.s32.totalorder %s17, 3
      %p163 = pnand %p161, %p162
      %p164 = pneg %p163
      // Predicated region
      $region9: #{tpu_custom_call.1} parent=5 // pred_check
        _
      $region10: #{tpu_custom_call.1} parent=5 // pred_check_branch
        %166 = sbr.rel (%p163) target = $region12
      $region11: #{tpu_custom_call.1} parent=5 // pred_region
        %s167 = ssub.s32 %s17, 1
        // Predicated region
        $region13: #{tpu_custom_call.1} parent=11 // pred_check
          %p168 = pneg %p64
        $region14: #{tpu_custom_call.1} parent=11 // pred_check_branch
          %170 = sbr.rel (%p168) target = $region16
        $region15: #{tpu_custom_call.1} parent=11 // pred_region
          _
        $region16: #{tpu_custom_call.1} parent=11 // pred_fallthru
          _
        // Predicated region
        $region17: #{tpu_custom_call.1} parent=11 // pred_check
          %p171 = pneg %p85
        $region18: #{tpu_custom_call.1} parent=11 // pred_check_branch
          %173 = sbr.rel (%p171) target = $region20
        $region19: #{tpu_custom_call.1} parent=11 // pred_region
          _
        $region20: #{tpu_custom_call.1} parent=11 // pred_fallthru
          _
        // Predicated region
        $region21: #{tpu_custom_call.1} parent=11 // pred_check
          %p174 = pneg %p106
        $region22: #{tpu_custom_call.1} parent=11 // pred_check_branch
          %176 = sbr.rel (%p174) target = $region24
        $region23: #{tpu_custom_call.1} parent=11 // pred_region
          _
        $region24: #{tpu_custom_call.1} parent=11 // pred_fallthru
          _
        // Predicated region
        $region25: #{tpu_custom_call.1} parent=11 // pred_check
          %p177 = pneg %p127
        $region26: #{tpu_custom_call.1} parent=11 // pred_check_branch
          %179 = sbr.rel (%p177) target = $region28
        $region27: #{tpu_custom_call.1} parent=11 // pred_region
          _
        $region28: #{tpu_custom_call.1} parent=11 // pred_fallthru
          _
      $region12: #{tpu_custom_call.1} parent=5 // pred_fallthru
        _
      %p180 = scmp.lt.s32.totalorder %s17, 2
      // Predicated region
      $region29: #{tpu_custom_call.1} parent=5 // pred_check
        %p181 = pneg %p180
      $region30: #{tpu_custom_call.1} parent=5 // pred_check_branch
        %183 = sbr.rel (%p181) target = $region32
      $region31: #{tpu_custom_call.1} parent=5 // pred_region
        // Predicated region
        $region33: #{tpu_custom_call.1} parent=31 // pred_check
          %p184 = pneg %p37
        $region34: #{tpu_custom_call.1} parent=31 // pred_check_branch
          %186 = sbr.rel (%p184) target = $region36
        $region35: #{tpu_custom_call.1} parent=31 // pred_region
          %s187 = sand.u32 %s27, 1
          %s188 = scalar_lea.sflag [#allocation3], %s187
          %s189 = sand.u32 %s27, 1
          %s190 = smul.addr %s189, 32
          %s191 = scalar_lea.vmem [#allocation2], %s190
          %s193 = ssub.s32 512, 512
          %194 = vsyncadd %s188, %s193
          %s195 = smul.addr %s17, 4
          %s196 = smul.addr %s195, 128
          %s197 = scalar_lea.hbm %s0, %s196
          %s199 = sshll.u32 %s191, 4
          %s200 = int_to_ptr.vmem [resolvable:$true] %s199
          %202 = dma.hbm_to_vmem [thread:$0]  %s197, 512, %s200, %s188
        $region36: #{tpu_custom_call.1} parent=31 // pred_fallthru
          _
      $region32: #{tpu_custom_call.1} parent=5 // pred_fallthru
        _
      %p203 = scmp.le.s32.totalorder 1, %s17
      %p204 = scmp.lt.s32.totalorder %s17, 3
      %p205 = pnand %p203, %p204
      %p206 = pneg %p205
      // Predicated region
      $region37: #{tpu_custom_call.1} parent=5 // pred_check
        _
      $region38: #{tpu_custom_call.1} parent=5 // pred_check_branch
        %208 = sbr.rel (%p205) target = $region40
      $region39: #{tpu_custom_call.1} parent=5 // pred_region
        %s209 = ssub.s32 %s17, 1
        %s210 = sand.u32 %s30, 1
        %s211 = scalar_lea.sflag [#allocation3], %s210
        %s212 = sand.u32 %s30, 1
        %s213 = smul.addr %s212, 32
        %s214 = scalar_lea.vmem [#allocation2], %s213
        // Predicated region
        $region41: #{tpu_custom_call.1} parent=39 // pred_check
          %p215 = pneg %p43
        $region42: #{tpu_custom_call.1} parent=39 // pred_check_branch
          %217 = sbr.rel (%p215) target = $region44
        $region43: #{tpu_custom_call.1} parent=39 // pred_region
          %218 = dma.done %s211, 512
        $region44: #{tpu_custom_call.1} parent=39 // pred_fallthru
          _
        %s219 = sand.u32 %s30, 1
        %s220 = scalar_lea.sflag [#allocation3], %s219
        %s221 = sand.u32 %s30, 1
        %s222 = smul.addr %s221, 32
        %s223 = scalar_lea.vmem [#allocation2], %s222
        %p224 = pneg %p43
        %p225 = pneg %p40
        %p226 = pneg %p64
        %p227 = pneg %p61
        %p228 = pneg %p85
        %p229 = pneg %p82
        %p230 = pneg %p106
        %p231 = pneg %p103
        %p232 = pneg %p127
        %p233 = pneg %p124
        %p234 = pneg %p153
        %p235 = pneg %p150
        %s236 = sand.u32 %s140, 1
        %s237 = scalar_lea.sflag [#allocation4], %s236
        %s238 = sand.u32 %s140, 1
        %s239 = smul.addr %s238, 24
        %s240 = scalar_lea.vmem [#allocation5], %s239
        %v241 = vld [vmem:[%s1] sm:$0xff]
        %v242 = vld [vmem:[%s214] sm:$0xff]
        %v243 = vld [vmem:[%s214 + $0x8] sm:$0xff]
        %v244 = vld [vmem:[%s214 + $0x10] sm:$0xff]
        %246 = vset.pattern.permute.xlu0 0
        %247 = vperm.xlu0 %246, %v241
        %v248 = vpop.permute.xlu0 %247
        %v250 = vmul.f32 %v242, %v248
        %v251 = vmul.f32 %v243, %v248
        %v252 = vmul.f32 %v244, %v248
        %v253 = vld [vmem:[%s214] sm:$0xff]
        %v254 = vld [vmem:[%s214 + $0x8] sm:$0xff]
        %v255 = vld [vmem:[%s214 + $0x10] sm:$0xff]
        %v256 = vld [vmem:[%s214 + $0x18] sm:$0xff]
        %257 = vset.pattern.permute.xlu0 1
        %258 = vperm.xlu0 %257, %v241
        %v259 = vpop.permute.xlu0 %258
        %v261 = vmul.f32 %v253, %v259
        %v262 = vmul.f32 %v254, %v259
        %v263 = vmul.f32 %v255, %v259
        %v264 = vmul.f32 %v256, %v259
        %269 = vrot.lane.b32.xlu0 %v261, 127
        %v270 = vpop.permute.xlu0 %269
        %271 = vrot.lane.b32.xlu0 %v262, 127
        %v272 = vpop.permute.xlu0 %271
        %273 = vrot.lane.b32.xlu0 %v263, 127
        %v274 = vpop.permute.xlu0 %273
        %275 = vrot.lane.b32.xlu0 %v264, 127
        %v276 = vpop.permute.xlu0 %275
        %vm277 = vcmask 1039360
        %v278 = vsel %vm277, %v270, %v272
        %v279 = vsel %vm277, %v272, %v274
        %v280 = vsel %vm277, %v274, %v276
        %v284 = vadd.f32 %v250, %v278
        %v285 = vadd.f32 %v251, %v279
        %v286 = vadd.f32 %v252, %v280
        %287 = vset.pattern.permute.xlu0 2
        %288 = vperm.xlu0 %287, %v241
        %v289 = vpop.permute.xlu0 %288
        %v291 = vmul.f32 %v253, %v289
        %v292 = vmul.f32 %v254, %v289
        %v293 = vmul.f32 %v255, %v289
        %v294 = vmul.f32 %v256, %v289
        %299 = vrot.lane.b32.xlu0 %v291, 126
        %v300 = vpop.permute.xlu0 %299
        %301 = vrot.lane.b32.xlu0 %v292, 126
        %v302 = vpop.permute.xlu0 %301
        %303 = vrot.lane.b32.xlu0 %v293, 126
        %v304 = vpop.permute.xlu0 %303
        %305 = vrot.lane.b32.xlu0 %v294, 126
        %v306 = vpop.permute.xlu0 %305
        %vm307 = vcmask 1031168
        %v308 = vsel %vm307, %v300, %v302
        %v309 = vsel %vm307, %v302, %v304
        %v310 = vsel %vm307, %v304, %v306
        %v314 = vadd.f32 %v284, %v308
        %v315 = vadd.f32 %v285, %v309
        %v316 = vadd.f32 %v286, %v310
        %317 = vset.pattern.permute.xlu0 3
        %318 = vperm.xlu0 %317, %v241
        %v319 = vpop.permute.xlu0 %318
        %v321 = vmul.f32 %v253, %v319
        %v322 = vmul.f32 %v254, %v319
        %v323 = vmul.f32 %v255, %v319
        %v324 = vmul.f32 %v256, %v319
        %329 = vrot.lane.b32.xlu0 %v321, 110
        %v330 = vpop.permute.xlu0 %329
        %331 = vrot.lane.b32.xlu0 %v322, 110
        %v332 = vpop.permute.xlu0 %331
        %333 = vrot.lane.b32.xlu0 %v323, 110
        %v334 = vpop.permute.xlu0 %333
        %335 = vrot.lane.b32.xlu0 %v324, 110
        %v336 = vpop.permute.xlu0 %335
        %vm337 = vcmask 900096
        %v338 = vsel %vm337, %v330, %v332
        %v339 = vsel %vm337, %v332, %v334
        %v340 = vsel %vm337, %v334, %v336
        %v344 = vadd.f32 %v314, %v338
        %v345 = vadd.f32 %v315, %v339
        %v346 = vadd.f32 %v316, %v340
        %347 = vset.pattern.permute.xlu0 4
        %348 = vperm.xlu0 %347, %v241
        %v349 = vpop.permute.xlu0 %348
        %v351 = vmul.f32 %v253, %v349
        %v352 = vmul.f32 %v254, %v349
        %v353 = vmul.f32 %v255, %v349
        %v354 = vmul.f32 %v256, %v349
        %359 = vrot.lane.b32.xlu0 %v351, 109
        %v360 = vpop.permute.xlu0 %359
        %361 = vrot.lane.b32.xlu0 %v352, 109
        %v362 = vpop.permute.xlu0 %361
        %363 = vrot.lane.b32.xlu0 %v353, 109
        %v364 = vpop.permute.xlu0 %363
        %365 = vrot.lane.b32.xlu0 %v354, 109
        %v366 = vpop.permute.xlu0 %365
        %vm367 = vcmask 891904
        %v368 = vsel %vm367, %v360, %v362
        %v369 = vsel %vm367, %v362, %v364
        %v370 = vsel %vm367, %v364, %v366
        %v374 = vadd.f32 %v344, %v368
        %v375 = vadd.f32 %v345, %v369
        %v376 = vadd.f32 %v346, %v370
        %377 = vset.pattern.permute.xlu0 5
        %378 = vperm.xlu0 %377, %v241
        %v379 = vpop.permute.xlu0 %378
        %v381 = vmul.f32 %v253, %v379
        %v382 = vmul.f32 %v254, %v379
        %v383 = vmul.f32 %v255, %v379
        %v384 = vmul.f32 %v256, %v379
        %389 = vrot.lane.b32.xlu0 %v381, 108
        %v390 = vpop.permute.xlu0 %389
        %391 = vrot.lane.b32.xlu0 %v382, 108
        %v392 = vpop.permute.xlu0 %391
        %393 = vrot.lane.b32.xlu0 %v383, 108
        %v394 = vpop.permute.xlu0 %393
        %395 = vrot.lane.b32.xlu0 %v384, 108
        %v396 = vpop.permute.xlu0 %395
        %vm397 = vcmask 883712
        %v398 = vsel %vm397, %v390, %v392
        %v399 = vsel %vm397, %v392, %v394
        %v400 = vsel %vm397, %v394, %v396
        %v404 = vadd.f32 %v374, %v398
        %v405 = vadd.f32 %v375, %v399
        %v406 = vadd.f32 %v376, %v400
        %407 = vset.pattern.permute.xlu0 6
        %408 = vperm.xlu0 %407, %v241
        %v409 = vpop.permute.xlu0 %408
        %v411 = vmul.f32 %v253, %v409
        %v412 = vmul.f32 %v254, %v409
        %v413 = vmul.f32 %v255, %v409
        %v414 = vmul.f32 %v256, %v409
        %419 = vrot.lane.b32.xlu0 %v411, 92
        %v420 = vpop.permute.xlu0 %419
        %421 = vrot.lane.b32.xlu0 %v412, 92
        %v422 = vpop.permute.xlu0 %421
        %423 = vrot.lane.b32.xlu0 %v413, 92
        %v424 = vpop.permute.xlu0 %423
        %425 = vrot.lane.b32.xlu0 %v414, 92
        %v426 = vpop.permute.xlu0 %425
        %vm427 = vcmask 752640
        %v428 = vsel %vm427, %v420, %v422
        %v429 = vsel %vm427, %v422, %v424
        %v430 = vsel %vm427, %v424, %v426
        %v434 = vadd.f32 %v404, %v428
        %v435 = vadd.f32 %v405, %v429
        %v436 = vadd.f32 %v406, %v430
        %437 = vset.pattern.permute.xlu0 7
        %438 = vperm.xlu0 %437, %v241
        %v439 = vpop.permute.xlu0 %438
        %v441 = vmul.f32 %v253, %v439
        %v442 = vmul.f32 %v254, %v439
        %v443 = vmul.f32 %v255, %v439
        %v444 = vmul.f32 %v256, %v439
        %449 = vrot.lane.b32.xlu0 %v441, 91
        %v450 = vpop.permute.xlu0 %449
        %451 = vrot.lane.b32.xlu0 %v442, 91
        %v452 = vpop.permute.xlu0 %451
        %453 = vrot.lane.b32.xlu0 %v443, 91
        %v454 = vpop.permute.xlu0 %453
        %455 = vrot.lane.b32.xlu0 %v444, 91
        %v456 = vpop.permute.xlu0 %455
        %vm457 = vcmask 744448
        %v458 = vsel %vm457, %v450, %v452
        %v459 = vsel %vm457, %v452, %v454
        %v460 = vsel %vm457, %v454, %v456
        %v464 = vadd.f32 %v434, %v458
        %v465 = vadd.f32 %v435, %v459
        %v466 = vadd.f32 %v436, %v460
        %467 = vset.pattern.permute.xlu0 8
        %468 = vperm.xlu0 %467, %v241
        %v469 = vpop.permute.xlu0 %468
        %v471 = vmul.f32 %v253, %v469
        %v472 = vmul.f32 %v254, %v469
        %v473 = vmul.f32 %v255, %v469
        %v474 = vmul.f32 %v256, %v469
        %479 = vrot.lane.b32.xlu0 %v471, 90
        %v480 = vpop.permute.xlu0 %479
        %481 = vrot.lane.b32.xlu0 %v472, 90
        %v482 = vpop.permute.xlu0 %481
        %483 = vrot.lane.b32.xlu0 %v473, 90
        %v484 = vpop.permute.xlu0 %483
        %485 = vrot.lane.b32.xlu0 %v474, 90
        %v486 = vpop.permute.xlu0 %485
        %vm487 = vcmask 736256
        %v488 = vsel %vm487, %v480, %v482
        %v489 = vsel %vm487, %v482, %v484
        %v490 = vsel %vm487, %v484, %v486
        %v494 = vadd.f32 %v464, %v488
        %v495 = vadd.f32 %v465, %v489
        %v496 = vadd.f32 %v466, %v490
        %v497 = vld [vmem:[%s2] sm:$0xff]
        %499 = vset.pattern.permute.xlu0 0
        %500 = vperm.xlu0 %499, %v497
        %v501 = vpop.permute.xlu0 %500
        %v503 = vadd.f32 %v494, %v501
        %v504 = vadd.f32 %v495, %v501
        %v505 = vadd.f32 %v496, %v501
        %v506 = vld [vmem:[%s3] sm:$0xff]
        %v507 = vld [vmem:[%s4] sm:$0xff]
        %509 = vset.pattern.permute.xlu0 0
        %510 = vperm.xlu0 %509, %v507
        %v511 = vpop.permute.xlu0 %510
        %vm513 = vcmask 64512
        %v515 = vsel %vm513, %v506, 0
        %517 = vmatprep.subr.mxu0 0.0
        %518 = vmatpush1.msra.mxu0 0.0
        %519 = vmatprep.subr.mxu0 0.0
        %520 = vmatpush1.msra.mxu0 0.0
        %521 = vmatprep.subr.mxu0 0.0
        %522 = vmatpush1.msra.mxu0 0.0
        %523 = vmatprep.subr.mxu0 0.0
        %524 = vmatpush1.msra.mxu0 0.0
        %525 = vmatprep.subr.mxu0 0.0
        %526 = vmatpush1.msra.mxu0 0.0
        %527 = vmatprep.subr.mxu0 0.0
        %528 = vmatpush1.msra.mxu0 0.0
        %529 = vmatprep.subr.mxu0 0.0
        %530 = vmatpush1.msra.mxu0 0.0
        %531 = vmatprep.subr.mxu0 0.0
        %532 = vmatpush1.msra.mxu0 0.0
        %533 = vmatprep.subr.mxu0 0.0
        %534 = vmatpush1.msra.mxu0 0.0
        %535 = vmatprep.subr.mxu0 0.0
        %536 = vmatpush1.msra.mxu0 0.0
        %537 = vmatprep.subr.mxu0 0.0
        %538 = vmatpush1.msra.mxu0 0.0
        %539 = vmatprep.subr.mxu0 0.0
        %540 = vmatpush1.msra.mxu0 0.0
        %541 = vmatprep.subr.mxu0 0.0
        %542 = vmatpush1.msra.mxu0 0.0
        %543 = vmatprep.subr.mxu0 0.0
        %544 = vmatpush1.msra.mxu0 0.0
        %545 = vmatprep.subr.mxu0 0.0
        %546 = vmatpush1.msra.mxu0 0.0
        %547 = vmatprep.subr.mxu0 %v504
        %548 = vmatpush1.msra.mxu0 %v503
        %549 = vmatprep.subr.mxu0 0.0
        %550 = vmatpush2.msra.mxu0 0.0
        %551 = vmatprep.subr.mxu0 0.0
        %552 = vmatpush2.msra.mxu0 0.0
        %553 = vmatprep.subr.mxu0 0.0
        %554 = vmatpush2.msra.mxu0 0.0
        %555 = vmatprep.subr.mxu0 0.0
        %556 = vmatpush2.msra.mxu0 0.0
        %557 = vmatprep.subr.mxu0 0.0
        %558 = vmatpush2.msra.mxu0 0.0
        %559 = vmatprep.subr.mxu0 0.0
        %560 = vmatpush2.msra.mxu0 0.0
        %561 = vmatprep.subr.mxu0 0.0
        %562 = vmatpush2.msra.mxu0 0.0
        %563 = vmatprep.subr.mxu0 0.0
        %564 = vmatpush2.msra.mxu0 0.0
        %565 = vmatprep.subr.mxu0 0.0
        %566 = vmatpush2.msra.mxu0 0.0
        %567 = vmatprep.subr.mxu0 0.0
        %568 = vmatpush2.msra.mxu0 0.0
        %569 = vmatprep.subr.mxu0 0.0
        %570 = vmatpush2.msra.mxu0 0.0
        %571 = vmatprep.subr.mxu0 0.0
        %572 = vmatpush2.msra.mxu0 0.0
        %573 = vmatprep.subr.mxu0 0.0
        %574 = vmatpush2.msra.mxu0 0.0
        %575 = vmatprep.subr.mxu0 0.0
        %576 = vmatpush2.msra.mxu0 0.0
        %577 = vmatprep.subr.mxu0 0.0
        %578 = vmatpush2.msra.mxu0 0.0
        %579 = vmatprep.subr.mxu0 0.0
        %580 = vmatpush2.msra.mxu0 0.0
        %581 = vmatprep.mubr.f32.mxu0 0.0
        %582 = vmatmul.mubr.f32.gmra.mxu0 %v515
        %v583 = vpop.f32.mrf.mxu0
        %v584 = vadd.f32 %v511, %v583
        %v585 = vpop.f32.mrf.mxu0
        %v586 = vadd.f32 %v511, %v585
        %587 = vdwg.mxu0
        %588 = vmatprep.subr.mxu0 0.0
        %589 = vmatpush1.msra.mxu0 0.0
        %590 = vmatprep.subr.mxu0 0.0
        %591 = vmatpush1.msra.mxu0 0.0
        %592 = vmatprep.subr.mxu0 0.0
        %593 = vmatpush1.msra.mxu0 0.0
        %594 = vmatprep.subr.mxu0 0.0
        %595 = vmatpush1.msra.mxu0 0.0
        %596 = vmatprep.subr.mxu0 0.0
        %597 = vmatpush1.msra.mxu0 0.0
        %598 = vmatprep.subr.mxu0 0.0
        %599 = vmatpush1.msra.mxu0 0.0
        %600 = vmatprep.subr.mxu0 0.0
        %601 = vmatpush1.msra.mxu0 0.0
        %602 = vmatprep.subr.mxu0 0.0
        %603 = vmatpush1.msra.mxu0 0.0
        %604 = vmatprep.subr.mxu0 0.0
        %605 = vmatpush1.msra.mxu0 0.0
        %606 = vmatprep.subr.mxu0 0.0
        %607 = vmatpush1.msra.mxu0 0.0
        %608 = vmatprep.subr.mxu0 0.0
        %609 = vmatpush1.msra.mxu0 0.0
        %610 = vmatprep.subr.mxu0 0.0
        %611 = vmatpush1.msra.mxu0 0.0
        %612 = vmatprep.subr.mxu0 0.0
        %613 = vmatpush1.msra.mxu0 0.0
        %614 = vmatprep.subr.mxu0 0.0
        %615 = vmatpush1.msra.mxu0 0.0
        %616 = vmatprep.subr.mxu0 0.0
        %617 = vmatpush1.msra.mxu0 0.0
        %618 = vmatprep.subr.mxu0 0.0
        %619 = vmatpush1.msra.mxu0 %v505
        %620 = vmatprep.subr.mxu0 0.0
        %621 = vmatpush2.msra.mxu0 0.0
        %622 = vmatprep.subr.mxu0 0.0
        %623 = vmatpush2.msra.mxu0 0.0
        %624 = vmatprep.subr.mxu0 0.0
        %625 = vmatpush2.msra.mxu0 0.0
        %626 = vmatprep.subr.mxu0 0.0
        %627 = vmatpush2.msra.mxu0 0.0
        %628 = vmatprep.subr.mxu0 0.0
        %629 = vmatpush2.msra.mxu0 0.0
        %630 = vmatprep.subr.mxu0 0.0
        %631 = vmatpush2.msra.mxu0 0.0
        %632 = vmatprep.subr.mxu0 0.0
        %633 = vmatpush2.msra.mxu0 0.0
        %634 = vmatprep.subr.mxu0 0.0
        %635 = vmatpush2.msra.mxu0 0.0
        %636 = vmatprep.subr.mxu0 0.0
        %637 = vmatpush2.msra.mxu0 0.0
        %638 = vmatprep.subr.mxu0 0.0
        %639 = vmatpush2.msra.mxu0 0.0
        %640 = vmatprep.subr.mxu0 0.0
        %641 = vmatpush2.msra.mxu0 0.0
        %642 = vmatprep.subr.mxu0 0.0
        %643 = vmatpush2.msra.mxu0 0.0
        %644 = vmatprep.subr.mxu0 0.0
        %645 = vmatpush2.msra.mxu0 0.0
        %646 = vmatprep.subr.mxu0 0.0
        %647 = vmatpush2.msra.mxu0 0.0
        %648 = vmatprep.subr.mxu0 0.0
        %649 = vmatpush2.msra.mxu0 0.0
        %650 = vmatprep.subr.mxu0 0.0
        %651 = vmatpush2.msra.mxu0 0.0
        %652 = vmatprep.mubr.f32.mxu0 0.0
        %653 = vmatmul.mubr.f32.gmra.mxu0 %v515
        %v654 = vpop.f32.mrf.mxu0
        %v655 = vadd.f32 %v511, %v654
        %v656 = vpop.f32.mrf.mxu0
        %657 = vdwg.mxu0
        %658 = vst [vmem:[%s240] sm:$0xff] %v584
        %659 = vst [vmem:[%s240 + $0x8] sm:$0xff] %v586
        %660 = vst [vmem:[%s240 + $0x10] sm:$0xff] %v655
        %s661 = sand.u32 %s140, 1
        %s662 = scalar_lea.sflag [#allocation4], %s661
        %s663 = sand.u32 %s140, 1
        %s664 = smul.addr %s663, 24
        %s665 = scalar_lea.vmem [#allocation5], %s664
        // Predicated region
        $region45: #{tpu_custom_call.1} parent=39 // pred_check
          %p666 = pneg %p150
        $region46: #{tpu_custom_call.1} parent=39 // pred_check_branch
          %668 = sbr.rel (%p666) target = $region48
        $region47: #{tpu_custom_call.1} parent=39 // pred_region
          %s670 = ssub.s32 384, 384
          %671 = vsyncadd %s662, %s670
          %s672 = smul.addr %s22, 3
          %s673 = smul.addr %s672, 128
          %s674 = scalar_lea.hbm %s5, %s673
          %s676 = sshll.u32 %s665, 4
          %s677 = int_to_ptr.vmem [resolvable:$true] %s676
          %679 = dma.vmem_to_hbm [thread:$0]  %s677, 384, %s674, %s662
        $region48: #{tpu_custom_call.1} parent=39 // pred_fallthru
          _
      $region40: #{tpu_custom_call.1} parent=5 // pred_fallthru
        _
      %p680 = scmp.le.s32.totalorder 2, %s17
      // Predicated region
      $region49: #{tpu_custom_call.1} parent=5 // pred_check
        %p681 = pneg %p680
      $region50: #{tpu_custom_call.1} parent=5 // pred_check_branch
        %683 = sbr.rel (%p681) target = $region52
      $region51: #{tpu_custom_call.1} parent=5 // pred_region
        %s684 = ssub.s32 %s17, 2
        // Predicated region
        $region53: #{tpu_custom_call.1} parent=51 // pred_check
          %p685 = pneg %p156
        $region54: #{tpu_custom_call.1} parent=51 // pred_check_branch
          %687 = sbr.rel (%p685) target = $region56
        $region55: #{tpu_custom_call.1} parent=51 // pred_region
          %s688 = sand.u32 %s141, 1
          %s689 = scalar_lea.sflag [#allocation4], %s688
          %s690 = sand.u32 %s141, 1
          %s691 = smul.addr %s690, 24
          %s692 = scalar_lea.vmem [#allocation5], %s691
          %693 = dma.done %s689, 384
        $region56: #{tpu_custom_call.1} parent=51 // pred_fallthru
          _
      $region52: #{tpu_custom_call.1} parent=5 // pred_fallthru
        _
    $region6: #{tpu_custom_call.1} parent=1 // loop_footer
      %s21 = sadd.s32 1, %s17
    $region7: #{tpu_custom_call.1} parent=1 // loop_footer_branch
      %16 = sbr.rel target = $region3
    $region8: #{tpu_custom_call.1} parent=1 // loop_exit
      _
    %694 = vsyncpa [#allocation3], 1
    %s695 = scalar_lea.sflag [#allocation3], 1
    %696 = vsyncpa %s695, 1
    %697 = vsyncpa [#allocation4], 1
    %s698 = scalar_lea.sflag [#allocation4], 1
    %699 = vsyncpa %s698, 1

</llo_original>
